<compile_context>
chip_gen: v5e
topology: v5e:2x2
jax: 0.10.0
libtpu: 0.0.40
codegen_flags: <defaults>
</compile_context>

<pallas_src>
import jax
import jax.numpy as jnp
from jax.experimental import pallas as pl
from jax.experimental.pallas import tpu as pltpu


def _round_up(x, m):
    return ((x + m - 1) // m) * m


def _vmem_capacity_bytes():
    """Physical VMEM per TensorCore; safe fallback if the query is unavailable."""
    try:
        return int(pltpu.get_tpu_info().vmem_capacity_bytes)
    except Exception:
        return 128 * 1024 * 1024


def _estimate_vmem_bytes(tm, in_p, h_p, out_p, n_blocks, out_itemsize, streaming):
    bf16, f32 = 2, 4
    x_b = 2 * tm * in_p * bf16                      # double-buffered input tile
    y_b = 2 * tm * out_p * out_itemsize             # double-buffered output tile
    fixed_w = in_p * h_p * bf16 + h_p * f32 + h_p * out_p * bf16 + out_p * f32
    if streaming:
        blk_w = 2 * 2 * (h_p * h_p * bf16 + h_p * f32)        # 2 mats+biases, 2-deep
        scratch = tm * h_p * f32                               # h carry
    else:
        blk_w = n_blocks * 2 * (h_p * h_p * bf16 + h_p * f32)  # resident, single-buffered
        scratch = 0
    live = 3 * tm * h_p * f32                       # in-kernel f32 intermediates headroom
    return x_b + y_b + fixed_w + blk_w + scratch + live + (4 << 20)


# --------------------------------------------------------------------------- #
# Kernels
# --------------------------------------------------------------------------- #
def _make_resident_kernel(n_blocks):
    """Whole forward on one batch tile; weights resident in VMEM (bf16 MXU, f32 acc)."""

    def kernel(x_ref, w_in_ref, b_in_ref, w1_ref, b1_ref, w2_ref, b2_ref,
               w_out_ref, b_out_ref, y_ref):
        cdt = w_in_ref.dtype            # bf16 MXU operand dtype (x already bf16)
        acc = jnp.float32

        h = jnp.dot(x_ref[...], w_in_ref[...], preferred_element_type=acc) + b_in_ref[...]

        def block(hh, w1, b1, w2, b2):
            # ReLU output lands directly in bf16 for the next dot (fewer f32 passes).
            t = jnp.maximum(jnp.dot(hh.astype(cdt), w1, preferred_element_type=acc) + b1,
                            0.0).astype(cdt)
            t = jnp.maximum(jnp.dot(t, w2, preferred_element_type=acc) + b2, 0.0)
            return t + hh               # residual add in f32

        if n_blocks <= 2:
            for i in range(n_blocks):                     # short: unroll at trace time
                h = block(h, w1_ref[i], b1_ref[i], w2_ref[i], b2_ref[i])
        else:
            h = jax.lax.fori_loop(                        # bounded live ranges, MXU fed
                0, n_blocks,
                lambda i, hh: block(hh, w1_ref[i], b1_ref[i], w2_ref[i], b2_ref[i]),
                h, unroll=2)

        y = jnp.dot(h.astype(cdt), w_out_ref[...], preferred_element_type=acc) + b_out_ref[...]
        y_ref[...] = y.astype(y_ref.dtype)

    return kernel


def _streaming_kernel(x_ref, w_in_ref, b_in_ref, w1_ref, b1_ref, w2_ref, b2_ref,
                      w_out_ref, b_out_ref, y_ref, h_acc):
    """Block weights streamed over grid axis 1; h carried in VMEM scratch."""
    cdt = w_in_ref.dtype
    acc = jnp.float32
    k = pl.program_id(1)

    @pl.when(k == 0)
    def _():
        h_acc[...] = (jnp.dot(x_ref[...], w_in_ref[...],
                              preferred_element_type=acc) + b_in_ref[...])

    h = h_acc[...]
    t = jnp.maximum(jnp.dot(h.astype(cdt), w1_ref[...],
                            preferred_element_type=acc) + b1_ref[...], 0.0).astype(cdt)
    t = jnp.maximum(jnp.dot(t, w2_ref[...],
                            preferred_element_type=acc) + b2_ref[...], 0.0)
    h_acc[...] = t + h

    @pl.when(k == pl.num_programs(1) - 1)
    def _():
        y = (jnp.dot(h_acc[...].astype(cdt), w_out_ref[...],
                     preferred_element_type=acc) + b_out_ref[...])
        y_ref[...] = y.astype(y_ref.dtype)


# --------------------------------------------------------------------------- #
# Wrapper
# --------------------------------------------------------------------------- #
def resnet_block_forward(x, params, *, tm=None, compute_dtype=jnp.bfloat16,
                         out_dtype=jnp.float32, stream_blocks=None):
    """x: (N, in_dim) float32. params: dict of pre-transposed f32 weights/biases."""
    N, in_dim = x.shape
    h_dim = params["w_in"].shape[1]
    out_dim = params["w_out"].shape[1]
    n_blocks = params["blk_w1"].shape[0]
    assert n_blocks >= 1

    # Lane-dense feature dims (multiples of 128).
    in_p = _round_up(in_dim, 128)
    h_p = _round_up(h_dim, 128)
    out_p = _round_up(out_dim, 128)
    out_itemsize = jnp.dtype(out_dtype).itemsize

    cap = _vmem_capacity_bytes()
    resident_w_bytes = (in_p * h_p + h_p * out_p + 2 * n_blocks * h_p * h_p) * 2  # bf16

    # Decide resident vs streamed block weights.
    if stream_blocks is None:
        stream_blocks = resident_w_bytes > int(0.45 * cap)

    # Batch tile selection.
    n8 = _round_up(N, 8)
    if tm is None:
        tm = 512 if (cap >= 100 * (1 << 20) and resident_w_bytes < 32 * (1 << 20)) else 256
    tm = max(8, min(tm, n8))
    # Keep >= 2 parallel grid steps when the batch allows it (v7x: 2 TCs/chip).
    if n8 >= 512 and tm > _round_up(n8 // 2, 8):
        tm = _round_up(n8 // 2, 8)
    n_pad = _round_up(N, tm)

    # VMEM budget: what we need, capped at ~85% of physical.
    vmem_need = _estimate_vmem_bytes(tm, in_p, h_p, out_p, n_blocks, out_itemsize,
                                     stream_blocks)
    vmem_limit = int(min(max(vmem_need, 32 * (1 << 20)), 0.85 * cap))

    # Zero-pad input (already in compute dtype -> half the DMA bytes) and params.
    x_p = jnp.zeros((n_pad, in_p), compute_dtype).at[:N, :in_dim].set(
        x.astype(compute_dtype))

    def pad2(a, r, c, dt):
        return jnp.zeros((r, c), dt).at[:a.shape[0], :a.shape[1]].set(a.astype(dt))

    def pad3(a, r, c, dt):
        return jnp.zeros((a.shape[0], r, c), dt).at[:, :a.shape[1], :a.shape[2]].set(
            a.astype(dt))

    w_in = pad2(params["w_in"], in_p, h_p, compute_dtype)
    b_in = pad2(params["b_in"], 1, h_p, jnp.float32)
    w1 = pad3(params["blk_w1"], h_p, h_p, compute_dtype)
    b1 = pad3(params["blk_b1"], 1, h_p, jnp.float32)
    w2 = pad3(params["blk_w2"], h_p, h_p, compute_dtype)
    b2 = pad3(params["blk_b2"], 1, h_p, jnp.float32)
    w_out = pad2(params["w_out"], h_p, out_p, compute_dtype)
    b_out = pad2(params["b_out"], 1, out_p, jnp.float32)

    args = (x_p, w_in, b_in, w1, b1, w2, b2, w_out, b_out)
    out_shape = jax.ShapeDtypeStruct((n_pad, out_p), out_dtype)

    if not stream_blocks:
        # ------------------ resident-weight path ------------------
        def const1(*shape):
            nd = len(shape)
            return pl.BlockSpec(shape, lambda i, _n=nd: (0,) * _n,
                                pipeline_mode=pl.Buffered(1))

        y_p = pl.pallas_call(
            _make_resident_kernel(n_blocks),
            out_shape=out_shape,
            grid_spec=pltpu.PrefetchScalarGridSpec(
                num_scalar_prefetch=0,
                grid=(n_pad // tm,),
                in_specs=[
                    pl.BlockSpec((tm, in_p), lambda i: (i, 0)),     # x batch tile
                    const1(in_p, h_p),                              # w_in
                    const1(1, h_p),                                 # b_in
                    const1(n_blocks, h_p, h_p),                     # blk_w1
                    const1(n_blocks, 1, h_p),                       # blk_b1
                    const1(n_blocks, h_p, h_p),                     # blk_w2
                    const1(n_blocks, 1, h_p),                       # blk_b2
                    const1(h_p, out_p),                             # w_out
                    const1(1, out_p),                               # b_out
                ],
                out_specs=pl.BlockSpec((tm, out_p), lambda i: (i, 0)),
            ),
            compiler_params=pltpu.CompilerParams(
                dimension_semantics=("parallel",),
                vmem_limit_bytes=vmem_limit,
            ),
        )(*args)
    else:
        # ------------------ streamed-block path ------------------
        def const2(*shape):
            nd = len(shape)
            return pl.BlockSpec(shape, lambda i, k, _n=nd: (0,) * _n,
                                pipeline_mode=pl.Buffered(1))

        y_p = pl.pallas_call(
            _streaming_kernel,
            out_shape=out_shape,
            grid_spec=pltpu.PrefetchScalarGridSpec(
                num_scalar_prefetch=0,
                grid=(n_pad // tm, n_blocks),
                in_specs=[
                    pl.BlockSpec((tm, in_p), lambda i, k: (i, 0)),          # x tile
                    const2(in_p, h_p),                                      # w_in
                    const2(1, h_p),                                         # b_in
                    pl.BlockSpec((None, h_p, h_p), lambda i, k: (k, 0, 0)),  # w1[k]
                    pl.BlockSpec((None, 1, h_p), lambda i, k: (k, 0, 0)),    # b1[k]
                    pl.BlockSpec((None, h_p, h_p), lambda i, k: (k, 0, 0)),  # w2[k]
                    pl.BlockSpec((None, 1, h_p), lambda i, k: (k, 0, 0)),    # b2[k]
                    const2(h_p, out_p),                                     # w_out
                    const2(1, out_p),                                       # b_out
                ],
                out_specs=pl.BlockSpec((tm, out_p), lambda i, k: (i, 0)),
                scratch_shapes=[pltpu.VMEM((tm, h_p), jnp.float32)],        # h carry
            ),
            compiler_params=pltpu.CompilerParams(
                dimension_semantics=("parallel", "arbitrary"),
                vmem_limit_bytes=vmem_limit,
            ),
        )(*args)

    return y_p[:N, :out_dim]


# --------------------------------------------------------------------------- #
# Params / reference
# --------------------------------------------------------------------------- #
def init_params(key, in_dim, h_dim, out_dim, n_blocks, scale=0.1):
    """Deterministic synthetic init (weights stored as (in, out) = W.T), f32."""
    ks = jax.random.split(key, 8)
    return {
        "w_in": scale * jax.random.normal(ks[0], (in_dim, h_dim), jnp.float32),
        "b_in": scale * jax.random.normal(ks[1], (1, h_dim), jnp.float32),
        "blk_w1": scale * jax.random.normal(ks[2], (n_blocks, h_dim, h_dim), jnp.float32),
        "blk_b1": scale * jax.random.normal(ks[3], (n_blocks, 1, h_dim), jnp.float32),
        "blk_w2": scale * jax.random.normal(ks[4], (n_blocks, h_dim, h_dim), jnp.float32),
        "blk_b2": scale * jax.random.normal(ks[5], (n_blocks, 1, h_dim), jnp.float32),
        "w_out": scale * jax.random.normal(ks[6], (h_dim, out_dim), jnp.float32),
        "b_out": scale * jax.random.normal(ks[7], (1, out_dim), jnp.float32),
    }


def reference_forward(x, params, compute_dtype=jnp.bfloat16):
    """Pure-JAX reference with the same bf16-operand / f32-accumulate recipe."""
    def mm(a, w):
        return jnp.dot(a.astype(compute_dtype), w.astype(compute_dtype),
                       preferred_element_type=jnp.float32)

    h = mm(x, params["w_in"]) + params["b_in"]
    for i in range(params["blk_w1"].shape[0]):
        t = jnp.maximum(mm(h, params["blk_w1"][i]) + params["blk_b1"][i], 0.0)
        t = jnp.maximum(mm(t, params["blk_w2"][i]) + params["blk_b2"][i], 0.0)
        h = t + h
    return mm(h, params["w_out"]) + params["b_out"]


if __name__ == "__main__":
    key = jax.random.PRNGKey(0)
    kx, kp = jax.random.split(key)

    batch, in_dim, h_dim, out_dim, n_blocks = 16, 32, 32, 16, 2
    x = jax.random.normal(kx, (batch, in_dim), jnp.float32)
    params = init_params(kp, in_dim, h_dim, out_dim, n_blocks)
    y_ref = reference_forward(x, params)

    # 1) resident-weight path (n_blocks <= 2 -> fully unrolled)
    y = jax.block_until_ready(resnet_block_forward(x, params))
    assert y.shape == (batch, out_dim)
    assert jnp.allclose(y, y_ref, atol=1e-3, rtol=1e-3), "mismatch (resident)"

    # 2) ragged batch (not a multiple of the tile): zero-pad + slice
    x2 = jax.random.normal(jax.random.PRNGKey(1), (13, in_dim), jnp.float32)
    y2 = jax.block_until_ready(resnet_block_forward(x2, params))
    assert y2.shape == (13, out_dim)
    assert jnp.allclose(y2, reference_forward(x2, params), atol=1e-3, rtol=1e-3), \
        "mismatch (ragged)"

    # 3) streamed-block path (second 'arbitrary' grid axis, h in VMEM scratch)
    y3 = jax.block_until_ready(resnet_block_forward(x, params, stream_blocks=True))
    assert jnp.allclose(y3, y_ref, atol=1e-3, rtol=1e-3), "mismatch (streamed)"

    # 4) deeper stack -> resident path with lax.fori_loop(unroll=2), bf16 writeback
    params5 = init_params(jax.random.PRNGKey(2), in_dim, h_dim, out_dim, 5)
    y5 = jax.block_until_ready(resnet_block_forward(x, params5, out_dtype=jnp.bfloat16))
    assert y5.dtype == jnp.bfloat16
    assert jnp.allclose(y5.astype(jnp.float32), reference_forward(x, params5),
                        atol=2e-2, rtol=2e-2), "mismatch (deep / bf16 out)"

    print("KERNEL_OK")
</pallas_src>

<mosaic_0001>
module attributes {stable_mosaic.version = 11 : i64} {
  func.func @kernel(%arg0: i32, %arg1: memref<16x128xbf16, #tpu.memory_space<vmem>>, %arg2: memref<128x128xbf16, #tpu.memory_space<vmem>>, %arg3: memref<1x128xf32, #tpu.memory_space<vmem>>, %arg4: memref<2x128x128xbf16, #tpu.memory_space<vmem>>, %arg5: memref<2x1x128xf32, #tpu.memory_space<vmem>>, %arg6: memref<2x128x128xbf16, #tpu.memory_space<vmem>>, %arg7: memref<2x1x128xf32, #tpu.memory_space<vmem>>, %arg8: memref<128x128xbf16, #tpu.memory_space<vmem>>, %arg9: memref<1x128xf32, #tpu.memory_space<vmem>>, %arg10: memref<16x128xf32, #tpu.memory_space<vmem>>) attributes {dimension_semantics = [#tpu.dimension_semantics<parallel>], iteration_bounds = array<i64: 1>, scalar_prefetch = 0 : i64, scratch_operands = 0 : i64, tpu.core_type = #tpu.core_type<tc>, window_params = [{transform_indices = @transform_0, window_bounds = array<i64: 16, 128>}, {pipeline_mode = #tpu.pipeline_mode<synchronous>, transform_indices = @transform_1, window_bounds = array<i64: 128, 128>}, {pipeline_mode = #tpu.pipeline_mode<synchronous>, transform_indices = @transform_2, window_bounds = array<i64: 1, 128>}, {pipeline_mode = #tpu.pipeline_mode<synchronous>, transform_indices = @transform_3, window_bounds = array<i64: 2, 128, 128>}, {pipeline_mode = #tpu.pipeline_mode<synchronous>, transform_indices = @transform_4, window_bounds = array<i64: 2, 1, 128>}, {pipeline_mode = #tpu.pipeline_mode<synchronous>, transform_indices = @transform_5, window_bounds = array<i64: 2, 128, 128>}, {pipeline_mode = #tpu.pipeline_mode<synchronous>, transform_indices = @transform_6, window_bounds = array<i64: 2, 1, 128>}, {pipeline_mode = #tpu.pipeline_mode<synchronous>, transform_indices = @transform_7, window_bounds = array<i64: 128, 128>}, {pipeline_mode = #tpu.pipeline_mode<synchronous>, transform_indices = @transform_8, window_bounds = array<i64: 1, 128>}, {transform_indices = @transform_9, window_bounds = array<i64: 16, 128>}]} {
    %c0 = arith.constant 0 : index
    %c0_0 = arith.constant 0 : index
    %0 = vector.load %arg1[%c0, %c0_0] : memref<16x128xbf16, #tpu.memory_space<vmem>>, vector<16x128xbf16>
    %c0_1 = arith.constant 0 : index
    %c0_2 = arith.constant 0 : index
    %1 = vector.load %arg2[%c0_1, %c0_2] : memref<128x128xbf16, #tpu.memory_space<vmem>>, vector<128x128xbf16>
    %cst = arith.constant dense<0.000000e+00> : vector<16x128xf32>
    %2 = tpu.matmul %0, %1, %cst {dimension_numbers = #tpu.dot_dimension_numbers<[1], [0], [0], [1], [0, 0, 1, 1], [], []>} : vector<16x128xbf16>, vector<128x128xbf16>, vector<16x128xf32> -> vector<16x128xf32>
    %c0_3 = arith.constant 0 : index
    %c0_4 = arith.constant 0 : index
    %3 = vector.load %arg3[%c0_3, %c0_4] : memref<1x128xf32, #tpu.memory_space<vmem>>, vector<1x128xf32>
    %4 = vector.broadcast %3 : vector<1x128xf32> to vector<16x128xf32>
    %5 = arith.addf %2, %4 : vector<16x128xf32>
    %c0_5 = arith.constant 0 : index
    %c0_6 = arith.constant 0 : index
    %c0_7 = arith.constant 0 : index
    %6 = vector.load %arg4[%c0_5, %c0_6, %c0_7] : memref<2x128x128xbf16, #tpu.memory_space<vmem>>, vector<1x128x128xbf16>
    %7 = vector.shape_cast %6 : vector<1x128x128xbf16> to vector<128x128xbf16>
    %c0_8 = arith.constant 0 : index
    %c0_9 = arith.constant 0 : index
    %c0_10 = arith.constant 0 : index
    %8 = vector.load %arg5[%c0_8, %c0_9, %c0_10] : memref<2x1x128xf32, #tpu.memory_space<vmem>>, vector<1x1x128xf32>
    %9 = vector.shape_cast %8 : vector<1x1x128xf32> to vector<1x128xf32>
    %c0_11 = arith.constant 0 : index
    %c0_12 = arith.constant 0 : index
    %c0_13 = arith.constant 0 : index
    %10 = vector.load %arg6[%c0_11, %c0_12, %c0_13] : memref<2x128x128xbf16, #tpu.memory_space<vmem>>, vector<1x128x128xbf16>
    %11 = vector.shape_cast %10 : vector<1x128x128xbf16> to vector<128x128xbf16>
    %c0_14 = arith.constant 0 : index
    %c0_15 = arith.constant 0 : index
    %c0_16 = arith.constant 0 : index
    %12 = vector.load %arg7[%c0_14, %c0_15, %c0_16] : memref<2x1x128xf32, #tpu.memory_space<vmem>>, vector<1x1x128xf32>
    %13 = vector.shape_cast %12 : vector<1x1x128xf32> to vector<1x128xf32>
    %14 = arith.truncf %5 : vector<16x128xf32> to vector<16x128xbf16>
    %cst_17 = arith.constant dense<0.000000e+00> : vector<16x128xf32>
    %15 = tpu.matmul %14, %7, %cst_17 {dimension_numbers = #tpu.dot_dimension_numbers<[1], [0], [0], [1], [0, 0, 1, 1], [], []>} : vector<16x128xbf16>, vector<128x128xbf16>, vector<16x128xf32> -> vector<16x128xf32>
    %16 = vector.broadcast %9 : vector<1x128xf32> to vector<16x128xf32>
    %17 = arith.addf %15, %16 : vector<16x128xf32>
    %cst_18 = arith.constant 0.000000e+00 : f32
    %18 = vector.broadcast %cst_18 : f32 to vector<16x128xf32>
    %19 = arith.maximumf %17, %18 : vector<16x128xf32>
    %20 = arith.truncf %19 : vector<16x128xf32> to vector<16x128xbf16>
    %cst_19 = arith.constant dense<0.000000e+00> : vector<16x128xf32>
    %21 = tpu.matmul %20, %11, %cst_19 {dimension_numbers = #tpu.dot_dimension_numbers<[1], [0], [0], [1], [0, 0, 1, 1], [], []>} : vector<16x128xbf16>, vector<128x128xbf16>, vector<16x128xf32> -> vector<16x128xf32>
    %22 = vector.broadcast %13 : vector<1x128xf32> to vector<16x128xf32>
    %23 = arith.addf %21, %22 : vector<16x128xf32>
    %cst_20 = arith.constant 0.000000e+00 : f32
    %24 = vector.broadcast %cst_20 : f32 to vector<16x128xf32>
    %25 = arith.maximumf %23, %24 : vector<16x128xf32>
    %26 = arith.addf %25, %5 : vector<16x128xf32>
    %c1 = arith.constant 1 : index
    %c0_21 = arith.constant 0 : index
    %c0_22 = arith.constant 0 : index
    %27 = vector.load %arg4[%c1, %c0_21, %c0_22] : memref<2x128x128xbf16, #tpu.memory_space<vmem>>, vector<1x128x128xbf16>
    %28 = vector.shape_cast %27 : vector<1x128x128xbf16> to vector<128x128xbf16>
    %c1_23 = arith.constant 1 : index
    %c0_24 = arith.constant 0 : index
    %c0_25 = arith.constant 0 : index
    %29 = vector.load %arg5[%c1_23, %c0_24, %c0_25] : memref<2x1x128xf32, #tpu.memory_space<vmem>>, vector<1x1x128xf32>
    %30 = vector.shape_cast %29 : vector<1x1x128xf32> to vector<1x128xf32>
    %c1_26 = arith.constant 1 : index
    %c0_27 = arith.constant 0 : index
    %c0_28 = arith.constant 0 : index
    %31 = vector.load %arg6[%c1_26, %c0_27, %c0_28] : memref<2x128x128xbf16, #tpu.memory_space<vmem>>, vector<1x128x128xbf16>
    %32 = vector.shape_cast %31 : vector<1x128x128xbf16> to vector<128x128xbf16>
    %c1_29 = arith.constant 1 : index
    %c0_30 = arith.constant 0 : index
    %c0_31 = arith.constant 0 : index
    %33 = vector.load %arg7[%c1_29, %c0_30, %c0_31] : memref<2x1x128xf32, #tpu.memory_space<vmem>>, vector<1x1x128xf32>
    %34 = vector.shape_cast %33 : vector<1x1x128xf32> to vector<1x128xf32>
    %35 = arith.truncf %26 : vector<16x128xf32> to vector<16x128xbf16>
    %cst_32 = arith.constant dense<0.000000e+00> : vector<16x128xf32>
    %36 = tpu.matmul %35, %28, %cst_32 {dimension_numbers = #tpu.dot_dimension_numbers<[1], [0], [0], [1], [0, 0, 1, 1], [], []>} : vector<16x128xbf16>, vector<128x128xbf16>, vector<16x128xf32> -> vector<16x128xf32>
    %37 = vector.broadcast %30 : vector<1x128xf32> to vector<16x128xf32>
    %38 = arith.addf %36, %37 : vector<16x128xf32>
    %cst_33 = arith.constant 0.000000e+00 : f32
    %39 = vector.broadcast %cst_33 : f32 to vector<16x128xf32>
    %40 = arith.maximumf %38, %39 : vector<16x128xf32>
    %41 = arith.truncf %40 : vector<16x128xf32> to vector<16x128xbf16>
    %cst_34 = arith.constant dense<0.000000e+00> : vector<16x128xf32>
    %42 = tpu.matmul %41, %32, %cst_34 {dimension_numbers = #tpu.dot_dimension_numbers<[1], [0], [0], [1], [0, 0, 1, 1], [], []>} : vector<16x128xbf16>, vector<128x128xbf16>, vector<16x128xf32> -> vector<16x128xf32>
    %43 = vector.broadcast %34 : vector<1x128xf32> to vector<16x128xf32>
    %44 = arith.addf %42, %43 : vector<16x128xf32>
    %cst_35 = arith.constant 0.000000e+00 : f32
    %45 = vector.broadcast %cst_35 : f32 to vector<16x128xf32>
    %46 = arith.maximumf %44, %45 : vector<16x128xf32>
    %47 = arith.addf %46, %26 : vector<16x128xf32>
    %48 = arith.truncf %47 : vector<16x128xf32> to vector<16x128xbf16>
    %c0_36 = arith.constant 0 : index
    %c0_37 = arith.constant 0 : index
    %49 = vector.load %arg8[%c0_36, %c0_37] : memref<128x128xbf16, #tpu.memory_space<vmem>>, vector<128x128xbf16>
    %cst_38 = arith.constant dense<0.000000e+00> : vector<16x128xf32>
    %50 = tpu.matmul %48, %49, %cst_38 {dimension_numbers = #tpu.dot_dimension_numbers<[1], [0], [0], [1], [0, 0, 1, 1], [], []>} : vector<16x128xbf16>, vector<128x128xbf16>, vector<16x128xf32> -> vector<16x128xf32>
    %c0_39 = arith.constant 0 : index
    %c0_40 = arith.constant 0 : index
    %51 = vector.load %arg9[%c0_39, %c0_40] : memref<1x128xf32, #tpu.memory_space<vmem>>, vector<1x128xf32>
    %52 = vector.broadcast %51 : vector<1x128xf32> to vector<16x128xf32>
    %53 = arith.addf %50, %52 : vector<16x128xf32>
    %c0_41 = arith.constant 0 : index
    %c0_42 = arith.constant 0 : index
    %54 = vector.load %arg10[%c0_41, %c0_42] : memref<16x128xf32, #tpu.memory_space<vmem>>, vector<16x128xf32>
    tpu.vector_store %arg10[%c0_41, %c0_42], %53 {strides = array<i32>} : memref<16x128xf32, #tpu.memory_space<vmem>>, vector<16x128xf32>,
    return
  }
  func.func @transform_0(%arg0: i32) -> (i32, i32) {
    %c0_i32 = arith.constant 0 : i32
    %c0_i32_0 = arith.constant 0 : i32
    return %arg0, %c0_i32 : i32, i32
  }
  func.func @transform_1(%arg0: i32) -> (i32, i32) {
    %c0_i32 = arith.constant 0 : i32
    %c0_i32_0 = arith.constant 0 : i32
    %c0_i32_1 = arith.constant 0 : i32
    return %c0_i32, %c0_i32_0 : i32, i32
  }
  func.func @transform_2(%arg0: i32) -> (i32, i32) {
    %c0_i32 = arith.constant 0 : i32
    %c0_i32_0 = arith.constant 0 : i32
    %c0_i32_1 = arith.constant 0 : i32
    return %c0_i32, %c0_i32_0 : i32, i32
  }
  func.func @transform_3(%arg0: i32) -> (i32, i32, i32) {
    %c0_i32 = arith.constant 0 : i32
    %c0_i32_0 = arith.constant 0 : i32
    %c0_i32_1 = arith.constant 0 : i32
    %c0_i32_2 = arith.constant 0 : i32
    return %c0_i32, %c0_i32_0, %c0_i32_1 : i32, i32, i32
  }
  func.func @transform_4(%arg0: i32) -> (i32, i32, i32) {
    %c0_i32 = arith.constant 0 : i32
    %c0_i32_0 = arith.constant 0 : i32
    %c0_i32_1 = arith.constant 0 : i32
    %c0_i32_2 = arith.constant 0 : i32
    return %c0_i32, %c0_i32_0, %c0_i32_1 : i32, i32, i32
  }
  func.func @transform_5(%arg0: i32) -> (i32, i32, i32) {
    %c0_i32 = arith.constant 0 : i32
    %c0_i32_0 = arith.constant 0 : i32
    %c0_i32_1 = arith.constant 0 : i32
    %c0_i32_2 = arith.constant 0 : i32
    return %c0_i32, %c0_i32_0, %c0_i32_1 : i32, i32, i32
  }
  func.func @transform_6(%arg0: i32) -> (i32, i32, i32) {
    %c0_i32 = arith.constant 0 : i32
    %c0_i32_0 = arith.constant 0 : i32
    %c0_i32_1 = arith.constant 0 : i32
    %c0_i32_2 = arith.constant 0 : i32
    return %c0_i32, %c0_i32_0, %c0_i32_1 : i32, i32, i32
  }
  func.func @transform_7(%arg0: i32) -> (i32, i32) {
    %c0_i32 = arith.constant 0 : i32
    %c0_i32_0 = arith.constant 0 : i32
    %c0_i32_1 = arith.constant 0 : i32
    return %c0_i32, %c0_i32_0 : i32, i32
  }
  func.func @transform_8(%arg0: i32) -> (i32, i32) {
    %c0_i32 = arith.constant 0 : i32
    %c0_i32_0 = arith.constant 0 : i32
    %c0_i32_1 = arith.constant 0 : i32
    return %c0_i32, %c0_i32_0 : i32, i32
  }
  func.func @transform_9(%arg0: i32) -> (i32, i32) {
    %c0_i32 = arith.constant 0 : i32
    %c0_i32_0 = arith.constant 0 : i32
    return %arg0, %c0_i32 : i32, i32
  }
}

</mosaic_0001>

<llo_original>
// kernel: tpu_custom_call.1
$region0: #{tpu_custom_call.1}
  #allocation0 [shape = 'u32[]', space=smem, size = 0x4, offset = 0x4, fixed_abs, tag = 'smem constant byte address 0x4 - core index']
  #allocation1 [shape = 'u32[72,128]{1,0:T(1,128)}', space=vmem, size = 0x9000, scoped, tag = 'internal scratch']
  %s0 = inlined_call_operand.hbm [shape: bf16[16,128], index: 0, kind: input, shape index: {}]
  %s1 = inlined_call_operand.hbm [shape: bf16[128,128], index: 1, kind: input, shape index: {}]
  %s2 = inlined_call_operand.hbm [shape: f32[1,128], index: 2, kind: input, shape index: {}]
  %s3 = inlined_call_operand.hbm [shape: bf16[2,128,128], index: 3, kind: input, shape index: {}]
  %s4 = inlined_call_operand.vmem [shape: f32[2,1,128], index: 4, kind: input, shape index: {}]
  %s5 = inlined_call_operand.hbm [shape: bf16[2,128,128], index: 5, kind: input, shape index: {}]
  %s6 = inlined_call_operand.vmem [shape: f32[2,1,128], index: 6, kind: input, shape index: {}]
  %s7 = inlined_call_operand.hbm [shape: bf16[128,128], index: 7, kind: input, shape index: {}]
  %s8 = inlined_call_operand.vmem [shape: f32[1,128], index: 8, kind: input, shape index: {}]
  %s9 = inlined_call_operand.hbm [shape: f32[16,128], index: 9, kind: output, shape index: {}]
  %s10 = sld [smem:[#allocation0]]
  $region70: #{tpu_custom_call.1} parent=0
    _
  %s12 = ssub.s32 1, %s10
  %s13 = scalar_select 0, %s12, %s10
  $region1: #{tpu_custom_call.1} parent=0
    #allocation2 [shape = 'u8[4096]{0}', space=vmem, size = 0x1000, scoped, tag = 'input window, operand 0, single buffered']
    #allocation3 [shape = 's32[1]{0}', space=sflag, size = 0x4, scoped, tag = 'scoped memory for tpu_custom_call.1']
    #allocation4 [shape = 's32[1]{0}', space=sflag, size = 0x4, scoped, tag = 'scoped memory for tpu_custom_call.1']
    #allocation5 [shape = 'u8[32768]{0}', space=vmem, size = 0x8000, scoped, tag = 'input window, operand 1, single buffered']
    #allocation6 [shape = 's32[1]{0}', space=sflag, size = 0x4, scoped, tag = 'scoped memory for tpu_custom_call.1']
    #allocation7 [shape = 'u8[512]{0}', space=vmem, size = 0x400, scoped, tag = 'input window, operand 2, single buffered']
    #allocation8 [shape = 'u8[65536]{0}', space=vmem, size = 0x10000, scoped, tag = 'input window, operand 3, single buffered']
    #allocation9 [shape = 's32[1]{0}', space=sflag, size = 0x4, scoped, tag = 'scoped memory for tpu_custom_call.1']
    #allocation10 [shape = 'u8[65536]{0}', space=vmem, size = 0x10000, scoped, tag = 'input window, operand 5, single buffered']
    #allocation11 [shape = 'u8[32768]{0}', space=vmem, size = 0x8000, scoped, tag = 'input window, operand 7, single buffered']
    #allocation12 [shape = 's32[1]{0}', space=sflag, size = 0x4, scoped, tag = 'scoped memory for tpu_custom_call.1']
    #allocation13 [shape = 'u8[8192]{0}', space=vmem, size = 0x2000, scoped, tag = 'output window, operand 0, single buffered']
    %14 = vsyncpa [#allocation3], 0
    %15 = vsyncpa [#allocation6], 0
    %16 = vsyncpa [#allocation9], 0
    %17 = vsyncpa [#allocation12], 0
    %18 = vsyncpa [#allocation4], 0
    // Predicated region
    $region2: #{tpu_custom_call.1} parent=1 // pred_check
      _
    $region3: #{tpu_custom_call.1} parent=1 // pred_check_branch
      %20 = sbr.rel (0) target = $region5
    $region4: #{tpu_custom_call.1} parent=1 // pred_region
      %22 = vsyncadd [#allocation3], 0
      %s23 = sshll.u32 %s0, 4
      %s24 = int_to_ptr.hbm [resolvable:$true] %s23
      %s25 = sshll.u32 [#allocation2], 4
      %s26 = int_to_ptr.vmem [resolvable:$true] %s25
      %31 = dma.hbm_to_vmem [thread:$0]  %s24, 128, %s26, [#allocation3], 64, 64, 4
    $region5: #{tpu_custom_call.1} parent=1 // pred_fallthru
      _
    // Predicated region
    $region6: #{tpu_custom_call.1} parent=1 // pred_check
      _
    $region7: #{tpu_custom_call.1} parent=1 // pred_check_branch
      %33 = sbr.rel (0) target = $region9
    $region8: #{tpu_custom_call.1} parent=1 // pred_region
      %35 = vsyncadd [#allocation6], 0
      %s36 = sshll.u32 %s1, 4
      %s37 = int_to_ptr.hbm [resolvable:$true] %s36
      %s38 = sshll.u32 [#allocation5], 4
      %s39 = int_to_ptr.vmem [resolvable:$true] %s38
      %44 = dma.hbm_to_vmem [thread:$0]  %s37, 1024, %s39, [#allocation6], 64, 64, 4
    $region9: #{tpu_custom_call.1} parent=1 // pred_fallthru
      _
    // Predicated region
    $region10: #{tpu_custom_call.1} parent=1 // pred_check
      _
    $region11: #{tpu_custom_call.1} parent=1 // pred_check_branch
      %46 = sbr.rel (0) target = $region13
    $region12: #{tpu_custom_call.1} parent=1 // pred_region
      %48 = vsyncadd [#allocation6], 0
      %s50 = sshll.u32 %s2, 4
      %s51 = int_to_ptr.hbm [resolvable:$true] %s50
      %s52 = sshll.u32 [#allocation7], 4
      %s53 = int_to_ptr.vmem [resolvable:$true] %s52
      %55 = dma.hbm_to_vmem [thread:$0]  %s51, 16, %s53, [#allocation6]
    $region13: #{tpu_custom_call.1} parent=1 // pred_fallthru
      _
    // Predicated region
    $region14: #{tpu_custom_call.1} parent=1 // pred_check
      _
    $region15: #{tpu_custom_call.1} parent=1 // pred_check_branch
      %57 = sbr.rel (0) target = $region17
    $region16: #{tpu_custom_call.1} parent=1 // pred_region
      %59 = vsyncadd [#allocation9], 0
      %s60 = sshll.u32 %s3, 4
      %s61 = int_to_ptr.hbm [resolvable:$true] %s60
      %s62 = sshll.u32 [#allocation8], 4
      %s63 = int_to_ptr.vmem [resolvable:$true] %s62
      %68 = dma.hbm_to_vmem [thread:$0]  %s61, 2048, %s63, [#allocation9], 64, 64, 4
    $region17: #{tpu_custom_call.1} parent=1 // pred_fallthru
      _
    // Predicated region
    $region18: #{tpu_custom_call.1} parent=1 // pred_check
      _
    $region19: #{tpu_custom_call.1} parent=1 // pred_check_branch
      %70 = sbr.rel (0) target = $region21
    $region20: #{tpu_custom_call.1} parent=1 // pred_region
      _
    $region21: #{tpu_custom_call.1} parent=1 // pred_fallthru
      _
    // Predicated region
    $region22: #{tpu_custom_call.1} parent=1 // pred_check
      _
    $region23: #{tpu_custom_call.1} parent=1 // pred_check_branch
      %72 = sbr.rel (0) target = $region25
    $region24: #{tpu_custom_call.1} parent=1 // pred_region
      %74 = vsyncadd [#allocation9], 0
      %s75 = sshll.u32 %s5, 4
      %s76 = int_to_ptr.hbm [resolvable:$true] %s75
      %s77 = sshll.u32 [#allocation10], 4
      %s78 = int_to_ptr.vmem [resolvable:$true] %s77
      %83 = dma.hbm_to_vmem [thread:$0]  %s76, 2048, %s78, [#allocation9], 64, 64, 4
    $region25: #{tpu_custom_call.1} parent=1 // pred_fallthru
      _
    // Predicated region
    $region26: #{tpu_custom_call.1} parent=1 // pred_check
      _
    $region27: #{tpu_custom_call.1} parent=1 // pred_check_branch
      %85 = sbr.rel (0) target = $region29
    $region28: #{tpu_custom_call.1} parent=1 // pred_region
      _
    $region29: #{tpu_custom_call.1} parent=1 // pred_fallthru
      _
    // Predicated region
    $region30: #{tpu_custom_call.1} parent=1 // pred_check
      _
    $region31: #{tpu_custom_call.1} parent=1 // pred_check_branch
      %87 = sbr.rel (0) target = $region33
    $region32: #{tpu_custom_call.1} parent=1 // pred_region
      %89 = vsyncadd [#allocation12], 0
      %s90 = sshll.u32 %s7, 4
      %s91 = int_to_ptr.hbm [resolvable:$true] %s90
      %s92 = sshll.u32 [#allocation11], 4
      %s93 = int_to_ptr.vmem [resolvable:$true] %s92
      %98 = dma.hbm_to_vmem [thread:$0]  %s91, 1024, %s93, [#allocation12], 64, 64, 4
    $region33: #{tpu_custom_call.1} parent=1 // pred_fallthru
      _
    // Predicated region
    $region34: #{tpu_custom_call.1} parent=1 // pred_check
      _
    $region35: #{tpu_custom_call.1} parent=1 // pred_check_branch
      %100 = sbr.rel (0) target = $region37
    $region36: #{tpu_custom_call.1} parent=1 // pred_region
      _
    $region37: #{tpu_custom_call.1} parent=1 // pred_fallthru
      _
    // Predicated region
    $region38: #{tpu_custom_call.1} parent=1 // pred_check
      _
    $region39: #{tpu_custom_call.1} parent=1 // pred_check_branch
      %102 = sbr.rel (0) target = $region41
    $region40: #{tpu_custom_call.1} parent=1 // pred_region
      %104 = dma.done [#allocation3], 128
    $region41: #{tpu_custom_call.1} parent=1 // pred_fallthru
      _
    // Predicated region
    $region42: #{tpu_custom_call.1} parent=1 // pred_check
      _
    $region43: #{tpu_custom_call.1} parent=1 // pred_check_branch
      %106 = sbr.rel (0) target = $region45
    $region44: #{tpu_custom_call.1} parent=1 // pred_region
      %108 = dma.done [#allocation6], 1024
    $region45: #{tpu_custom_call.1} parent=1 // pred_fallthru
      _
    // Predicated region
    $region46: #{tpu_custom_call.1} parent=1 // pred_check
      _
    $region47: #{tpu_custom_call.1} parent=1 // pred_check_branch
      %110 = sbr.rel (0) target = $region49
    $region48: #{tpu_custom_call.1} parent=1 // pred_region
      %112 = dma.done [#allocation6], 16
    $region49: #{tpu_custom_call.1} parent=1 // pred_fallthru
      _
    // Predicated region
    $region50: #{tpu_custom_call.1} parent=1 // pred_check
      _
    $region51: #{tpu_custom_call.1} parent=1 // pred_check_branch
      %114 = sbr.rel (0) target = $region53
    $region52: #{tpu_custom_call.1} parent=1 // pred_region
      %116 = dma.done [#allocation9], 2048
    $region53: #{tpu_custom_call.1} parent=1 // pred_fallthru
      _
    // Predicated region
    $region54: #{tpu_custom_call.1} parent=1 // pred_check
      _
    $region55: #{tpu_custom_call.1} parent=1 // pred_check_branch
      %118 = sbr.rel (0) target = $region57
    $region56: #{tpu_custom_call.1} parent=1 // pred_region
      %120 = dma.done [#allocation9], 2048
    $region57: #{tpu_custom_call.1} parent=1 // pred_fallthru
      _
    // Predicated region
    $region58: #{tpu_custom_call.1} parent=1 // pred_check
      _
    $region59: #{tpu_custom_call.1} parent=1 // pred_check_branch
      %122 = sbr.rel (0) target = $region61
    $region60: #{tpu_custom_call.1} parent=1 // pred_region
      %124 = dma.done [#allocation12], 1024
    $region61: #{tpu_custom_call.1} parent=1 // pred_fallthru
      _
    %v125 = vld [vmem:[#allocation2] sm:$0xf]
    %v126 = vld [vmem:[#allocation2 + $0x4] sm:$0xf]
    %v127 = vld [vmem:[#allocation5] sm:$0xf]
    %v128 = vld [vmem:[#allocation5 + $0x4] sm:$0xf]
    %v129 = vld [vmem:[#allocation5 + $0x8] sm:$0xf]
    %v130 = vld [vmem:[#allocation5 + $0xc] sm:$0xf]
    %v131 = vld [vmem:[#allocation5 + $0x10] sm:$0xf]
    %v132 = vld [vmem:[#allocation5 + $0x14] sm:$0xf]
    %v133 = vld [vmem:[#allocation5 + $0x18] sm:$0xf]
    %v134 = vld [vmem:[#allocation5 + $0x1c] sm:$0xf]
    %v135 = vld [vmem:[#allocation5 + $0x20] sm:$0xf]
    %v136 = vld [vmem:[#allocation5 + $0x24] sm:$0xf]
    %v137 = vld [vmem:[#allocation5 + $0x28] sm:$0xf]
    %v138 = vld [vmem:[#allocation5 + $0x2c] sm:$0xf]
    %v139 = vld [vmem:[#allocation5 + $0x30] sm:$0xf]
    %v140 = vld [vmem:[#allocation5 + $0x34] sm:$0xf]
    %v141 = vld [vmem:[#allocation5 + $0x38] sm:$0xf]
    %v142 = vld [vmem:[#allocation5 + $0x3c] sm:$0xf]
    %v143 = vld [vmem:[#allocation7] sm:$0x1]
    %v145 = vperm.slane %v143, 0
    %v149 = vunpack.c.l.b16 %v125
    %v150 = vunpack.c.l.b16 %v126
    %v151 = vpack.c.b16 %v150, %v149
    %v169 = vunpack.c.l.b16 %v127
    %v170 = vunpack.c.l.b16 %v128
    %v171 = vunpack.c.l.b16 %v129
    %v172 = vunpack.c.l.b16 %v130
    %v173 = vunpack.c.l.b16 %v131
    %v174 = vunpack.c.l.b16 %v132
    %v175 = vunpack.c.l.b16 %v133
    %v176 = vunpack.c.l.b16 %v134
    %v177 = vunpack.c.l.b16 %v135
    %v178 = vunpack.c.l.b16 %v136
    %v179 = vunpack.c.l.b16 %v137
    %v180 = vunpack.c.l.b16 %v138
    %v181 = vunpack.c.l.b16 %v139
    %v182 = vunpack.c.l.b16 %v140
    %v183 = vunpack.c.l.b16 %v141
    %v184 = vunpack.c.l.b16 %v142
    %v185 = vpack.c.b16 %v170, %v169
    %v186 = vpack.c.b16 %v172, %v171
    %v187 = vpack.c.b16 %v174, %v173
    %v188 = vpack.c.b16 %v176, %v175
    %v189 = vpack.c.b16 %v178, %v177
    %v190 = vpack.c.b16 %v180, %v179
    %v191 = vpack.c.b16 %v182, %v181
    %v192 = vpack.c.b16 %v184, %v183
    %201 = vmatpush.bf16.msra.mxu0 %v192
    %202 = vmatpush.bf16.msra.mxu0 %v191
    %203 = vmatpush.bf16.msra.mxu0 %v190
    %204 = vmatpush.bf16.msra.mxu0 %v189
    %205 = vmatpush.bf16.msra.mxu0 %v188
    %206 = vmatpush.bf16.msra.mxu0 %v187
    %207 = vmatpush.bf16.msra.mxu0 %v186
    %208 = vmatpush.bf16.msra.mxu0 %v185
    %209 = vmatmul.bf16.gmra.mxu0 %v151
    %v210 = vpop.f32.mrf.mxu0
    %v211 = vadd.f32 %v145, %v210
    %v212 = vpop.f32.mrf.mxu0
    %v213 = vadd.f32 %v145, %v212
    %214 = vdwg.mxu0
    %v215 = vld [vmem:[#allocation8] sm:$0xf]
    %v216 = vld [vmem:[#allocation8 + $0x4] sm:$0xf]
    %v217 = vld [vmem:[#allocation8 + $0x8] sm:$0xf]
    %v218 = vld [vmem:[#allocation8 + $0xc] sm:$0xf]
    %v219 = vld [vmem:[#allocation8 + $0x10] sm:$0xf]
    %v220 = vld [vmem:[#allocation8 + $0x14] sm:$0xf]
    %v221 = vld [vmem:[#allocation8 + $0x18] sm:$0xf]
    %v222 = vld [vmem:[#allocation8 + $0x1c] sm:$0xf]
    %v223 = vld [vmem:[#allocation8 + $0x20] sm:$0xf]
    %v224 = vld [vmem:[#allocation8 + $0x24] sm:$0xf]
    %v225 = vld [vmem:[#allocation8 + $0x28] sm:$0xf]
    %v226 = vld [vmem:[#allocation8 + $0x2c] sm:$0xf]
    %v227 = vld [vmem:[#allocation8 + $0x30] sm:$0xf]
    %v228 = vld [vmem:[#allocation8 + $0x34] sm:$0xf]
    %v229 = vld [vmem:[#allocation8 + $0x38] sm:$0xf]
    %v230 = vld [vmem:[#allocation8 + $0x3c] sm:$0xf]
    %v231 = vld [vmem:[%s4] sm:$0x1]
    %v232 = vld [vmem:[#allocation10] sm:$0xf]
    %v233 = vld [vmem:[#allocation10 + $0x4] sm:$0xf]
    %v234 = vld [vmem:[#allocation10 + $0x8] sm:$0xf]
    %v235 = vld [vmem:[#allocation10 + $0xc] sm:$0xf]
    %v236 = vld [vmem:[#allocation10 + $0x10] sm:$0xf]
    %v237 = vld [vmem:[#allocation10 + $0x14] sm:$0xf]
    %v238 = vld [vmem:[#allocation10 + $0x18] sm:$0xf]
    %v239 = vld [vmem:[#allocation10 + $0x1c] sm:$0xf]
    %v240 = vld [vmem:[#allocation10 + $0x20] sm:$0xf]
    %v241 = vld [vmem:[#allocation10 + $0x24] sm:$0xf]
    %v242 = vld [vmem:[#allocation10 + $0x28] sm:$0xf]
    %v243 = vld [vmem:[#allocation10 + $0x2c] sm:$0xf]
    %v244 = vld [vmem:[#allocation10 + $0x30] sm:$0xf]
    %v245 = vld [vmem:[#allocation10 + $0x34] sm:$0xf]
    %v246 = vld [vmem:[#allocation10 + $0x38] sm:$0xf]
    %v247 = vld [vmem:[#allocation10 + $0x3c] sm:$0xf]
    %v248 = vld [vmem:[%s6] sm:$0x1]
    %v249 = vpack.c.bf16 %v213, %v211
    %v251 = vperm.slane %v231, 0
    %v269 = vunpack.c.l.b16 %v215
    %v270 = vunpack.c.l.b16 %v216
    %v271 = vunpack.c.l.b16 %v217
    %v272 = vunpack.c.l.b16 %v218
    %v273 = vunpack.c.l.b16 %v219
    %v274 = vunpack.c.l.b16 %v220
    %v275 = vunpack.c.l.b16 %v221
    %v276 = vunpack.c.l.b16 %v222
    %v277 = vunpack.c.l.b16 %v223
    %v278 = vunpack.c.l.b16 %v224
    %v279 = vunpack.c.l.b16 %v225
    %v280 = vunpack.c.l.b16 %v226
    %v281 = vunpack.c.l.b16 %v227
    %v282 = vunpack.c.l.b16 %v228
    %v283 = vunpack.c.l.b16 %v229
    %v284 = vunpack.c.l.b16 %v230
    %v285 = vpack.c.b16 %v270, %v269
    %v286 = vpack.c.b16 %v272, %v271
    %v287 = vpack.c.b16 %v274, %v273
    %v288 = vpack.c.b16 %v276, %v275
    %v289 = vpack.c.b16 %v278, %v277
    %v290 = vpack.c.b16 %v280, %v279
    %v291 = vpack.c.b16 %v282, %v281
    %v292 = vpack.c.b16 %v284, %v283
    %301 = vmatpush.bf16.msra.mxu0 %v292
    %302 = vmatpush.bf16.msra.mxu0 %v291
    %303 = vmatpush.bf16.msra.mxu0 %v290
    %304 = vmatpush.bf16.msra.mxu0 %v289
    %305 = vmatpush.bf16.msra.mxu0 %v288
    %306 = vmatpush.bf16.msra.mxu0 %v287
    %307 = vmatpush.bf16.msra.mxu0 %v286
    %308 = vmatpush.bf16.msra.mxu0 %v285
    %309 = vmatmul.bf16.gmra.mxu0 %v249
    %v310 = vpop.f32.mrf.mxu0
    %v311 = vadd.f32 %v251, %v310
    %v312 = vpop.f32.mrf.mxu0
    %v313 = vadd.f32 %v251, %v312
    %314 = vdwg.mxu0
    %v315 = vmax.f32 %v311, 0.0
    %v316 = vmax.f32 %v313, 0.0
    %v317 = vpack.c.bf16 %v316, %v315
    %v319 = vperm.slane %v248, 0
    %v337 = vunpack.c.l.b16 %v232
    %v338 = vunpack.c.l.b16 %v233
    %v339 = vunpack.c.l.b16 %v234
    %v340 = vunpack.c.l.b16 %v235
    %v341 = vunpack.c.l.b16 %v236
    %v342 = vunpack.c.l.b16 %v237
    %v343 = vunpack.c.l.b16 %v238
    %v344 = vunpack.c.l.b16 %v239
    %v345 = vunpack.c.l.b16 %v240
    %v346 = vunpack.c.l.b16 %v241
    %v347 = vunpack.c.l.b16 %v242
    %v348 = vunpack.c.l.b16 %v243
    %v349 = vunpack.c.l.b16 %v244
    %v350 = vunpack.c.l.b16 %v245
    %v351 = vunpack.c.l.b16 %v246
    %v352 = vunpack.c.l.b16 %v247
    %v353 = vpack.c.b16 %v338, %v337
    %v354 = vpack.c.b16 %v340, %v339
    %v355 = vpack.c.b16 %v342, %v341
    %v356 = vpack.c.b16 %v344, %v343
    %v357 = vpack.c.b16 %v346, %v345
    %v358 = vpack.c.b16 %v348, %v347
    %v359 = vpack.c.b16 %v350, %v349
    %v360 = vpack.c.b16 %v352, %v351
    %369 = vmatpush.bf16.msra.mxu0 %v360
    %370 = vmatpush.bf16.msra.mxu0 %v359
    %371 = vmatpush.bf16.msra.mxu0 %v358
    %372 = vmatpush.bf16.msra.mxu0 %v357
    %373 = vmatpush.bf16.msra.mxu0 %v356
    %374 = vmatpush.bf16.msra.mxu0 %v355
    %375 = vmatpush.bf16.msra.mxu0 %v354
    %376 = vmatpush.bf16.msra.mxu0 %v353
    %377 = vmatmul.bf16.gmra.mxu0 %v317
    %v378 = vpop.f32.mrf.mxu0
    %v379 = vadd.f32 %v319, %v378
    %v380 = vpop.f32.mrf.mxu0
    %v381 = vadd.f32 %v319, %v380
    %382 = vdwg.mxu0
    %v383 = vmax.f32 %v379, 0.0
    %v384 = vmax.f32 %v381, 0.0
    %v385 = vadd.f32 %v383, %v211
    %v386 = vadd.f32 %v384, %v213
    %s387 = scalar_lea.vmem [#allocation8], 64
    %v388 = vld [vmem:[%s387] sm:$0xf]
    %v389 = vld [vmem:[%s387 + $0x4] sm:$0xf]
    %v390 = vld [vmem:[%s387 + $0x8] sm:$0xf]
    %v391 = vld [vmem:[%s387 + $0xc] sm:$0xf]
    %v392 = vld [vmem:[%s387 + $0x10] sm:$0xf]
    %v393 = vld [vmem:[%s387 + $0x14] sm:$0xf]
    %v394 = vld [vmem:[%s387 + $0x18] sm:$0xf]
    %v395 = vld [vmem:[%s387 + $0x1c] sm:$0xf]
    %v396 = vld [vmem:[%s387 + $0x20] sm:$0xf]
    %v397 = vld [vmem:[%s387 + $0x24] sm:$0xf]
    %v398 = vld [vmem:[%s387 + $0x28] sm:$0xf]
    %v399 = vld [vmem:[%s387 + $0x2c] sm:$0xf]
    %v400 = vld [vmem:[%s387 + $0x30] sm:$0xf]
    %v401 = vld [vmem:[%s387 + $0x34] sm:$0xf]
    %v402 = vld [vmem:[%s387 + $0x38] sm:$0xf]
    %v403 = vld [vmem:[%s387 + $0x3c] sm:$0xf]
    %s404 = scalar_lea.vmem %s4, 1
    %v405 = vld [vmem:[%s404] sm:$0x1]
    %s406 = scalar_lea.vmem [#allocation10], 64
    %v407 = vld [vmem:[%s406] sm:$0xf]
    %v408 = vld [vmem:[%s406 + $0x4] sm:$0xf]
    %v409 = vld [vmem:[%s406 + $0x8] sm:$0xf]
    %v410 = vld [vmem:[%s406 + $0xc] sm:$0xf]
    %v411 = vld [vmem:[%s406 + $0x10] sm:$0xf]
    %v412 = vld [vmem:[%s406 + $0x14] sm:$0xf]
    %v413 = vld [vmem:[%s406 + $0x18] sm:$0xf]
    %v414 = vld [vmem:[%s406 + $0x1c] sm:$0xf]
    %v415 = vld [vmem:[%s406 + $0x20] sm:$0xf]
    %v416 = vld [vmem:[%s406 + $0x24] sm:$0xf]
    %v417 = vld [vmem:[%s406 + $0x28] sm:$0xf]
    %v418 = vld [vmem:[%s406 + $0x2c] sm:$0xf]
    %v419 = vld [vmem:[%s406 + $0x30] sm:$0xf]
    %v420 = vld [vmem:[%s406 + $0x34] sm:$0xf]
    %v421 = vld [vmem:[%s406 + $0x38] sm:$0xf]
    %v422 = vld [vmem:[%s406 + $0x3c] sm:$0xf]
    %s423 = scalar_lea.vmem %s6, 1
    %v424 = vld [vmem:[%s423] sm:$0x1]
    %v425 = vpack.c.bf16 %v386, %v385
    %v427 = vperm.slane %v405, 0
    %v445 = vunpack.c.l.b16 %v388
    %v446 = vunpack.c.l.b16 %v389
    %v447 = vunpack.c.l.b16 %v390
    %v448 = vunpack.c.l.b16 %v391
    %v449 = vunpack.c.l.b16 %v392
    %v450 = vunpack.c.l.b16 %v393
    %v451 = vunpack.c.l.b16 %v394
    %v452 = vunpack.c.l.b16 %v395
    %v453 = vunpack.c.l.b16 %v396
    %v454 = vunpack.c.l.b16 %v397
    %v455 = vunpack.c.l.b16 %v398
    %v456 = vunpack.c.l.b16 %v399
    %v457 = vunpack.c.l.b16 %v400
    %v458 = vunpack.c.l.b16 %v401
    %v459 = vunpack.c.l.b16 %v402
    %v460 = vunpack.c.l.b16 %v403
    %v461 = vpack.c.b16 %v446, %v445
    %v462 = vpack.c.b16 %v448, %v447
    %v463 = vpack.c.b16 %v450, %v449
    %v464 = vpack.c.b16 %v452, %v451
    %v465 = vpack.c.b16 %v454, %v453
    %v466 = vpack.c.b16 %v456, %v455
    %v467 = vpack.c.b16 %v458, %v457
    %v468 = vpack.c.b16 %v460, %v459
    %477 = vmatpush.bf16.msra.mxu0 %v468
    %478 = vmatpush.bf16.msra.mxu0 %v467
    %479 = vmatpush.bf16.msra.mxu0 %v466
    %480 = vmatpush.bf16.msra.mxu0 %v465
    %481 = vmatpush.bf16.msra.mxu0 %v464
    %482 = vmatpush.bf16.msra.mxu0 %v463
    %483 = vmatpush.bf16.msra.mxu0 %v462
    %484 = vmatpush.bf16.msra.mxu0 %v461
    %485 = vmatmul.bf16.gmra.mxu0 %v425
    %v486 = vpop.f32.mrf.mxu0
    %v487 = vadd.f32 %v427, %v486
    %v488 = vpop.f32.mrf.mxu0
    %v489 = vadd.f32 %v427, %v488
    %490 = vdwg.mxu0
    %v491 = vmax.f32 %v487, 0.0
    %v492 = vmax.f32 %v489, 0.0
    %v493 = vpack.c.bf16 %v492, %v491
    %v495 = vperm.slane %v424, 0
    %v513 = vunpack.c.l.b16 %v407
    %v514 = vunpack.c.l.b16 %v408
    %v515 = vunpack.c.l.b16 %v409
    %v516 = vunpack.c.l.b16 %v410
    %v517 = vunpack.c.l.b16 %v411
    %v518 = vunpack.c.l.b16 %v412
    %v519 = vunpack.c.l.b16 %v413
    %v520 = vunpack.c.l.b16 %v414
    %v521 = vunpack.c.l.b16 %v415
    %v522 = vunpack.c.l.b16 %v416
    %v523 = vunpack.c.l.b16 %v417
    %v524 = vunpack.c.l.b16 %v418
    %v525 = vunpack.c.l.b16 %v419
    %v526 = vunpack.c.l.b16 %v420
    %v527 = vunpack.c.l.b16 %v421
    %v528 = vunpack.c.l.b16 %v422
    %v529 = vpack.c.b16 %v514, %v513
    %v530 = vpack.c.b16 %v516, %v515
    %v531 = vpack.c.b16 %v518, %v517
    %v532 = vpack.c.b16 %v520, %v519
    %v533 = vpack.c.b16 %v522, %v521
    %v534 = vpack.c.b16 %v524, %v523
    %v535 = vpack.c.b16 %v526, %v525
    %v536 = vpack.c.b16 %v528, %v527
    %545 = vmatpush.bf16.msra.mxu0 %v536
    %546 = vmatpush.bf16.msra.mxu0 %v535
    %547 = vmatpush.bf16.msra.mxu0 %v534
    %548 = vmatpush.bf16.msra.mxu0 %v533
    %549 = vmatpush.bf16.msra.mxu0 %v532
    %550 = vmatpush.bf16.msra.mxu0 %v531
    %551 = vmatpush.bf16.msra.mxu0 %v530
    %552 = vmatpush.bf16.msra.mxu0 %v529
    %553 = vmatmul.bf16.gmra.mxu0 %v493
    %v554 = vpop.f32.mrf.mxu0
    %v555 = vadd.f32 %v495, %v554
    %v556 = vpop.f32.mrf.mxu0
    %v557 = vadd.f32 %v495, %v556
    %558 = vdwg.mxu0
    %v559 = vmax.f32 %v555, 0.0
    %v560 = vmax.f32 %v557, 0.0
    %v561 = vadd.f32 %v559, %v385
    %v562 = vadd.f32 %v560, %v386
    %v563 = vpack.c.bf16 %v562, %v561
    %v564 = vld [vmem:[#allocation11] sm:$0xf]
    %v565 = vld [vmem:[#allocation11 + $0x4] sm:$0xf]
    %v566 = vld [vmem:[#allocation11 + $0x8] sm:$0xf]
    %v567 = vld [vmem:[#allocation11 + $0xc] sm:$0xf]
    %v568 = vld [vmem:[#allocation11 + $0x10] sm:$0xf]
    %v569 = vld [vmem:[#allocation11 + $0x14] sm:$0xf]
    %v570 = vld [vmem:[#allocation11 + $0x18] sm:$0xf]
    %v571 = vld [vmem:[#allocation11 + $0x1c] sm:$0xf]
    %v572 = vld [vmem:[#allocation11 + $0x20] sm:$0xf]
    %v573 = vld [vmem:[#allocation11 + $0x24] sm:$0xf]
    %v574 = vld [vmem:[#allocation11 + $0x28] sm:$0xf]
    %v575 = vld [vmem:[#allocation11 + $0x2c] sm:$0xf]
    %v576 = vld [vmem:[#allocation11 + $0x30] sm:$0xf]
    %v577 = vld [vmem:[#allocation11 + $0x34] sm:$0xf]
    %v578 = vld [vmem:[#allocation11 + $0x38] sm:$0xf]
    %v579 = vld [vmem:[#allocation11 + $0x3c] sm:$0xf]
    %v580 = vld [vmem:[%s8] sm:$0x1]
    %v582 = vperm.slane %v580, 0
    %v600 = vunpack.c.l.b16 %v564
    %v601 = vunpack.c.l.b16 %v565
    %v602 = vunpack.c.l.b16 %v566
    %v603 = vunpack.c.l.b16 %v567
    %v604 = vunpack.c.l.b16 %v568
    %v605 = vunpack.c.l.b16 %v569
    %v606 = vunpack.c.l.b16 %v570
    %v607 = vunpack.c.l.b16 %v571
    %v608 = vunpack.c.l.b16 %v572
    %v609 = vunpack.c.l.b16 %v573
    %v610 = vunpack.c.l.b16 %v574
    %v611 = vunpack.c.l.b16 %v575
    %v612 = vunpack.c.l.b16 %v576
    %v613 = vunpack.c.l.b16 %v577
    %v614 = vunpack.c.l.b16 %v578
    %v615 = vunpack.c.l.b16 %v579
    %v616 = vpack.c.b16 %v601, %v600
    %v617 = vpack.c.b16 %v603, %v602
    %v618 = vpack.c.b16 %v605, %v604
    %v619 = vpack.c.b16 %v607, %v606
    %v620 = vpack.c.b16 %v609, %v608
    %v621 = vpack.c.b16 %v611, %v610
    %v622 = vpack.c.b16 %v613, %v612
    %v623 = vpack.c.b16 %v615, %v614
    %632 = vmatpush.bf16.msra.mxu0 %v623
    %633 = vmatpush.bf16.msra.mxu0 %v622
    %634 = vmatpush.bf16.msra.mxu0 %v621
    %635 = vmatpush.bf16.msra.mxu0 %v620
    %636 = vmatpush.bf16.msra.mxu0 %v619
    %637 = vmatpush.bf16.msra.mxu0 %v618
    %638 = vmatpush.bf16.msra.mxu0 %v617
    %639 = vmatpush.bf16.msra.mxu0 %v616
    %640 = vmatmul.bf16.gmra.mxu0 %v563
    %v641 = vpop.f32.mrf.mxu0
    %v642 = vadd.f32 %v582, %v641
    %v643 = vpop.f32.mrf.mxu0
    %v644 = vadd.f32 %v582, %v643
    %645 = vdwg.mxu0
    %646 = vst [vmem:[#allocation13] sm:$0xff] %v642
    %647 = vst [vmem:[#allocation13 + $0x8] sm:$0xff] %v644
    // Predicated region
    $region62: #{tpu_custom_call.1} parent=1 // pred_check
      _
    $region63: #{tpu_custom_call.1} parent=1 // pred_check_branch
      %649 = sbr.rel (0) target = $region65
    $region64: #{tpu_custom_call.1} parent=1 // pred_region
      %651 = vsyncadd [#allocation4], 0
      %s652 = sshll.u32 [#allocation13], 4
      %s653 = int_to_ptr.vmem [resolvable:$true] %s652
      %s654 = sshll.u32 %s9, 4
      %s655 = int_to_ptr.hbm [resolvable:$true] %s654
      %660 = dma.vmem_to_hbm [thread:$0]  %s653, 256, %s655, [#allocation4], 128, 128, 8
    $region65: #{tpu_custom_call.1} parent=1 // pred_fallthru
      _
    // Predicated region
    $region66: #{tpu_custom_call.1} parent=1 // pred_check
      _
    $region67: #{tpu_custom_call.1} parent=1 // pred_check_branch
      %662 = sbr.rel (0) target = $region69
    $region68: #{tpu_custom_call.1} parent=1 // pred_region
      %664 = dma.done [#allocation4], 256
    $region69: #{tpu_custom_call.1} parent=1 // pred_fallthru
      _
    %665 = vsyncpa [#allocation3], 1
    %666 = vsyncpa [#allocation6], 1
    %667 = vsyncpa [#allocation9], 1
    %668 = vsyncpa [#allocation12], 1
    %669 = vsyncpa [#allocation4], 1

</llo_original>
